<compile_context>
chip_gen: v7x
topology: tpu7x:2x2x1
jax: 0.10.0
libtpu: 0.0.40
codegen_flags: <defaults>
</compile_context>

<pallas_src>
from typing import NamedTuple

import jax
import jax.numpy as jnp
from jax.experimental import pallas as pl
from jax.experimental.pallas import tpu as pltpu


# ----------------------------------------------------------------------------
# Hardware-aware sizing helpers
# ----------------------------------------------------------------------------

def _round_up(x, m):
    return ((x + m - 1) // m) * m


def _is_v7x():
    try:
        kind = jax.devices()[0].device_kind.lower()
    except Exception:
        kind = ""
    return ("v7" in kind) or ("7x" in kind)


def _num_tensorcores():
    # v7x has 2 TensorCores per chip; v5e/v6e have 1.
    return 2 if _is_v7x() else 1


def _vmem_cap_bytes():
    """Per-generation ceiling for vmem_limit_bytes (headroom below physical)."""
    phys = None
    try:
        info = pltpu.get_tpu_info()
        phys = int(getattr(info, "vmem_capacity_bytes", 0)) or None
    except Exception:
        phys = None
    if phys is None:
        phys = (64 << 20) if _is_v7x() else (128 << 20)
    if phys <= (64 << 20):       # v7x: 64 MiB physical per TensorCore
        return 56 << 20          # leave room for compiler scratch / semaphores
    return 100 << 20             # v5e / v6e: 128 MiB physical


def _vmem_limit_bytes(tb, Hp, Ip=None):
    """Single-buffered weights + double-buffered activation blocks + f32
    intermediates (xw / hw_zr / z / r / n), clamped to the per-chip cap."""
    weight_bytes = (Hp * 2 * Hp + Hp * Hp) * 2           # whzr + whn (bf16)
    if Ip is not None:
        weight_bytes += Ip * 3 * Hp * 2 + 3 * Hp * 4     # wx (bf16) + bias (f32)
        act_bytes = tb * (Ip + 2 * Hp) * 4               # x + h in, out block
    else:
        act_bytes = tb * (3 * Hp + 2 * Hp) * 4           # xw + h in, out block
    inter_bytes = tb * 8 * Hp * 4
    needed = weight_bytes + 2 * act_bytes + inter_bytes
    return max(32 << 20, min(int(1.25 * needed) + (1 << 20), _vmem_cap_bytes()))


def _pick_batch_tile(B, block_b):
    tb = min(_round_up(B, 8), block_b)
    if _num_tensorcores() > 1:
        # give each v7x TensorCore at least one batch tile (grid >= 2 steps)
        align = 256 if B >= 512 else 8
        tb = max(8, min(tb, _round_up(pl.cdiv(B, 2), align)))
    Bp = _round_up(B, tb)
    return tb, Bp


# ----------------------------------------------------------------------------
# Kernels
# ----------------------------------------------------------------------------

def _relu_gru_kernel(x_ref, h_ref, wx_ref, whzr_ref, whn_ref, b_ref, out_ref):
    # x_ref:    (tb, Ip)     f32
    # h_ref:    (tb, Hp)     f32
    # wx_ref:   (Ip, 3Hp)    bf16   [Wih_z^T | Wih_r^T | Wih_n^T]
    # whzr_ref: (Hp, 2Hp)    bf16   [Whh_z^T | Whh_r^T]
    # whn_ref:  (Hp, Hp)     bf16    Whh_n^T
    # b_ref:    (1, 3Hp)     f32    [b_z | b_r | b_n]
    # out_ref:  (tb, Hp)     f32
    H = out_ref.shape[-1]

    x = x_ref[...]
    h = h_ref[...]                               # f32, kept for exact blend
    x_bf = x.astype(jnp.bfloat16)
    h_bf = h.astype(jnp.bfloat16)
    b = b_ref[...]

    # Fused lane-dense MXU matmuls, f32 accumulation.
    xw = jnp.dot(x_bf, wx_ref[...], preferred_element_type=jnp.float32) + b   # (tb, 3Hp)
    hw_zr = jnp.dot(h_bf, whzr_ref[...], preferred_element_type=jnp.float32)  # (tb, 2Hp)

    z = jax.nn.sigmoid(xw[:, 0:H] + hw_zr[:, 0:H])
    r = jax.nn.sigmoid(xw[:, H:2 * H] + hw_zr[:, H:2 * H])

    hr_bf = (h * r).astype(jnp.bfloat16)
    n_pre = xw[:, 2 * H:3 * H] + jnp.dot(
        hr_bf, whn_ref[...], preferred_element_type=jnp.float32)
    n = jnp.maximum(n_pre, 0.0)

    # (1 - z) * n + z * h  ==  n + z * (h - n)
    out_ref[...] = (n + z * (h - n)).astype(out_ref.dtype)


def _relu_gru_step_kernel(xw_ref, h_ref, whzr_ref, whn_ref, out_ref):
    # Recurrent step with the input projection (bias included) precomputed:
    # only the two h-dependent matmuls sit on the serial critical path.
    H = out_ref.shape[-1]

    xw = xw_ref[...]                             # (tb, 3Hp) f32, bias folded in
    h = h_ref[...]                               # (tb, Hp)  f32
    h_bf = h.astype(jnp.bfloat16)

    hw_zr = jnp.dot(h_bf, whzr_ref[...], preferred_element_type=jnp.float32)

    z = jax.nn.sigmoid(xw[:, 0:H] + hw_zr[:, 0:H])
    r = jax.nn.sigmoid(xw[:, H:2 * H] + hw_zr[:, H:2 * H])

    hr_bf = (h * r).astype(jnp.bfloat16)
    n_pre = xw[:, 2 * H:3 * H] + jnp.dot(
        hr_bf, whn_ref[...], preferred_element_type=jnp.float32)
    n = jnp.maximum(n_pre, 0.0)

    out_ref[...] = (n + z * (h - n)).astype(out_ref.dtype)


# ----------------------------------------------------------------------------
# Parameter packing (hoisted out of any time loop)
# ----------------------------------------------------------------------------

class ReLuGRUParams(NamedTuple):
    wx: jax.Array       # (Ip, 3*Hp) bf16
    whzr: jax.Array     # (Hp, 2*Hp) bf16
    whn: jax.Array      # (Hp, Hp)   bf16
    b: jax.Array        # (1, 3*Hp)  f32
    input_size: int     # original I
    hidden_size: int    # original H


def prepare_relu_gru_params(weight_ih, weight_hh, bias):
    """Pad H/I to multiples of 128 and pre-transpose/concat ONCE.

    weight_ih: (3, H, I), weight_hh: (3, H, H), bias: (3, H)
    Zero-padding keeps the math exact: padded hidden state stays 0 across steps.
    """
    H, I = weight_ih.shape[1], weight_ih.shape[2]
    Hp, Ip = _round_up(H, 128), _round_up(I, 128)

    wih = jnp.pad(weight_ih.astype(jnp.float32), ((0, 0), (0, Hp - H), (0, Ip - I)))
    whh = jnp.pad(weight_hh.astype(jnp.float32), ((0, 0), (0, Hp - H), (0, Hp - H)))
    b = jnp.pad(bias.astype(jnp.float32), ((0, 0), (0, Hp - H)))

    wih_t = jnp.transpose(wih, (0, 2, 1))        # (3, Ip, Hp)
    whh_t = jnp.transpose(whh, (0, 2, 1))        # (3, Hp, Hp)
    wx = jnp.concatenate([wih_t[0], wih_t[1], wih_t[2]], axis=1).astype(jnp.bfloat16)
    whzr = jnp.concatenate([whh_t[0], whh_t[1]], axis=1).astype(jnp.bfloat16)
    whn = whh_t[2].astype(jnp.bfloat16)
    bcat = jnp.concatenate([b[0], b[1], b[2]]).reshape(1, 3 * Hp)
    return ReLuGRUParams(wx=wx, whzr=whzr, whn=whn, b=bcat,
                         input_size=I, hidden_size=H)


def _check_weights_fit(weight_bytes):
    if weight_bytes > 0.8 * _vmem_cap_bytes():
        # TODO(synk): add an N-tiling grid axis over the fused gate columns
        # (and fp8 weights on v7x / int8 on v5e-v6e) for very large H instead
        # of loading full-width weights into VMEM.
        raise NotImplementedError(
            "hidden_size too large for full-width weights in VMEM; needs column tiling")


# ----------------------------------------------------------------------------
# Wrappers
# ----------------------------------------------------------------------------

def relu_gru_cell_prepared(x, hx, params: ReLuGRUParams, *, block_b=512):
    """One GRU step with pre-packed params. x: (B, I), hx: (B, H) -> (B, H)."""
    B = x.shape[0]
    H, I = params.hidden_size, params.input_size
    Ip = params.wx.shape[0]
    Hp = params.whn.shape[0]
    _check_weights_fit((Ip * 3 * Hp + Hp * 2 * Hp + Hp * Hp) * 2)

    tb, Bp = _pick_batch_tile(B, block_b)

    x = x.astype(jnp.float32)
    hx = hx.astype(jnp.float32)
    # Single-call path: pad to lane/sublane-aligned shapes (for recurrent
    # stepping use relu_gru_sequence, which pads once outside the loop).
    if x.shape != (Bp, Ip):
        x = jnp.pad(x, ((0, Bp - x.shape[0]), (0, Ip - x.shape[1])))
    if hx.shape != (Bp, Hp):
        hx = jnp.pad(hx, ((0, Bp - hx.shape[0]), (0, Hp - hx.shape[1])))

    out = pl.pallas_call(
        _relu_gru_kernel,
        out_shape=jax.ShapeDtypeStruct((Bp, Hp), jnp.float32),
        grid_spec=pltpu.PrefetchScalarGridSpec(
            num_scalar_prefetch=0,
            grid=(Bp // tb,),
            in_specs=[
                pl.BlockSpec((tb, Ip), lambda i: (i, 0)),     # x tile
                pl.BlockSpec((tb, Hp), lambda i: (i, 0)),     # h tile
                # grid-invariant operands: single-buffered (no re-fetch)
                pl.BlockSpec((Ip, 3 * Hp), lambda i: (0, 0),
                             pipeline_mode=pl.Buffered(1)),
                pl.BlockSpec((Hp, 2 * Hp), lambda i: (0, 0),
                             pipeline_mode=pl.Buffered(1)),
                pl.BlockSpec((Hp, Hp), lambda i: (0, 0),
                             pipeline_mode=pl.Buffered(1)),
                pl.BlockSpec((1, 3 * Hp), lambda i: (0, 0),
                             pipeline_mode=pl.Buffered(1)),
            ],
            out_specs=pl.BlockSpec((tb, Hp), lambda i: (i, 0)),
        ),
        compiler_params=pltpu.CompilerParams(
            dimension_semantics=("parallel",),
            vmem_limit_bytes=_vmem_limit_bytes(tb, Hp, Ip),
        ),
    )(x, hx, params.wx, params.whzr, params.whn, params.b)
    return out[:B, :H]


def relu_gru_cell(x, hx, weight_ih, weight_hh, bias):
    """Convenience wrapper matching ReLuGRUCell.forward (packs params per call)."""
    params = prepare_relu_gru_params(weight_ih, weight_hh, bias)
    return relu_gru_cell_prepared(x, hx, params)


def _build_step_call(Bp, Hp, tb):
    """pallas_call for the recurrent step with precomputed input projection."""
    return pl.pallas_call(
        _relu_gru_step_kernel,
        out_shape=jax.ShapeDtypeStruct((Bp, Hp), jnp.float32),
        grid_spec=pltpu.PrefetchScalarGridSpec(
            num_scalar_prefetch=0,
            grid=(Bp // tb,),
            in_specs=[
                pl.BlockSpec((tb, 3 * Hp), lambda i: (i, 0)),    # xw tile
                pl.BlockSpec((tb, Hp), lambda i: (i, 0)),        # h tile
                pl.BlockSpec((Hp, 2 * Hp), lambda i: (0, 0),
                             pipeline_mode=pl.Buffered(1)),
                pl.BlockSpec((Hp, Hp), lambda i: (0, 0),
                             pipeline_mode=pl.Buffered(1)),
            ],
            out_specs=pl.BlockSpec((tb, Hp), lambda i: (i, 0)),
        ),
        compiler_params=pltpu.CompilerParams(
            dimension_semantics=("parallel",),
            vmem_limit_bytes=_vmem_limit_bytes(tb, Hp, None),
        ),
    )


def relu_gru_sequence(xs, h0, params: ReLuGRUParams, *, block_b=512):
    """RNN stepping: xs (T, B, I), h0 (B, H) -> (T, B, H).

    The input projection for ALL timesteps is one big matmul outside the scan;
    padding/slicing happens once outside the loop; the per-step kernel only
    runs the two h-dependent matmuls on the serial critical path.
    """
    T, B, _ = xs.shape
    H = params.hidden_size
    Ip = params.wx.shape[0]
    Hp = params.whn.shape[0]
    _check_weights_fit((Hp * 2 * Hp + Hp * Hp) * 2)

    tb, Bp = _pick_batch_tile(B, block_b)

    xs = xs.astype(jnp.float32)
    h0 = h0.astype(jnp.float32)
    if xs.shape != (T, Bp, Ip):
        xs = jnp.pad(xs, ((0, 0), (0, Bp - xs.shape[1]), (0, Ip - xs.shape[2])))
    if h0.shape != (Bp, Hp):
        h0 = jnp.pad(h0, ((0, Bp - h0.shape[0]), (0, Hp - h0.shape[1])))

    # Precompute x @ wx (+ bias) for every timestep in one lane-dense matmul.
    xw_all = jnp.dot(xs.reshape(T * Bp, Ip).astype(jnp.bfloat16), params.wx,
                     preferred_element_type=jnp.float32) + params.b
    xw_all = xw_all.reshape(T, Bp, 3 * Hp)

    step_call = _build_step_call(Bp, Hp, tb)

    def step(h, xw_t):
        h_new = step_call(xw_t, h, params.whzr, params.whn)
        return h_new, h_new

    _, hs = jax.lax.scan(step, h0, xw_all)
    return hs[:, :B, :H]


# ----------------------------------------------------------------------------
# References & self-test
# ----------------------------------------------------------------------------

def _reference(x, hx, weight_ih, weight_hh, bias):
    z = jax.nn.sigmoid(x @ weight_ih[0].T + hx @ weight_hh[0].T + bias[0])
    r = jax.nn.sigmoid(x @ weight_ih[1].T + hx @ weight_hh[1].T + bias[1])
    n = jnp.maximum(x @ weight_ih[2].T + (hx * r) @ weight_hh[2].T + bias[2], 0.0)
    return (1.0 - z) * n + z * hx


def _reference_sequence(xs, h0, weight_ih, weight_hh, bias):
    h = h0
    outs = []
    for t in range(xs.shape[0]):
        h = _reference(xs[t], h, weight_ih, weight_hh, bias)
        outs.append(h)
    return jnp.stack(outs)


if __name__ == "__main__":
    key = jax.random.PRNGKey(0)
    k1, k2, k3, k4, k5, k6 = jax.random.split(key, 6)

    batch = 8
    input_size = 16
    hidden_size = 32
    seq = 4

    # Deterministic synthetic parameters (module's __init__ leaves them uninitialized).
    weight_ih = jax.random.normal(k1, (3, hidden_size, input_size), jnp.float32) * 0.1
    weight_hh = jax.random.normal(k2, (3, hidden_size, hidden_size), jnp.float32) * 0.1
    bias = jax.random.normal(k3, (3, hidden_size), jnp.float32) * 0.1

    x = jax.random.normal(k4, (batch, input_size), jnp.float32)
    hx = jax.random.normal(k5, (batch, hidden_size), jnp.float32)

    # --- single step (matches ReLuGRUCell.forward) ---
    out = relu_gru_cell(x, hx, weight_ih, weight_hh, bias)
    out = jax.block_until_ready(out)
    ref = _reference(x, hx, weight_ih, weight_hh, bias)
    assert out.shape == (batch, hidden_size)
    # bf16 MXU operands (f32 accumulate) -> loosened tolerance vs f32 reference.
    assert jnp.allclose(out, ref, atol=2e-2, rtol=2e-2), float(jnp.max(jnp.abs(out - ref)))

    # --- recurrent stepping with precomputed input projection ---
    xs = jax.random.normal(k6, (seq, batch, input_size), jnp.float32)
    params = prepare_relu_gru_params(weight_ih, weight_hh, bias)
    hs = relu_gru_sequence(xs, hx, params)
    hs = jax.block_until_ready(hs)
    ref_seq = _reference_sequence(xs, hx, weight_ih, weight_hh, bias)
    assert hs.shape == (seq, batch, hidden_size)
    assert jnp.allclose(hs, ref_seq, atol=5e-2, rtol=5e-2), float(jnp.max(jnp.abs(hs - ref_seq)))

    print("KERNEL_OK")
</pallas_src>

<mosaic_0001>
module attributes {stable_mosaic.version = 11 : i64} {
  func.func @_relu_gru_kernel(%arg0: i32, %arg1: memref<8x128xf32, #tpu.memory_space<vmem>>, %arg2: memref<8x128xf32, #tpu.memory_space<vmem>>, %arg3: memref<128x384xbf16, #tpu.memory_space<vmem>>, %arg4: memref<128x256xbf16, #tpu.memory_space<vmem>>, %arg5: memref<128x128xbf16, #tpu.memory_space<vmem>>, %arg6: memref<1x384xf32, #tpu.memory_space<vmem>>, %arg7: memref<8x128xf32, #tpu.memory_space<vmem>>) attributes {dimension_semantics = [#tpu.dimension_semantics<parallel>], iteration_bounds = array<i64: 1>, scalar_prefetch = 0 : i64, scratch_operands = 0 : i64, tpu.core_type = #tpu.core_type<tc>, window_params = [{transform_indices = @transform_0, window_bounds = array<i64: 8, 128>}, {transform_indices = @transform_1, window_bounds = array<i64: 8, 128>}, {pipeline_mode = #tpu.pipeline_mode<synchronous>, transform_indices = @transform_2, window_bounds = array<i64: 128, 384>}, {pipeline_mode = #tpu.pipeline_mode<synchronous>, transform_indices = @transform_3, window_bounds = array<i64: 128, 256>}, {pipeline_mode = #tpu.pipeline_mode<synchronous>, transform_indices = @transform_4, window_bounds = array<i64: 128, 128>}, {pipeline_mode = #tpu.pipeline_mode<synchronous>, transform_indices = @transform_5, window_bounds = array<i64: 1, 384>}, {transform_indices = @transform_6, window_bounds = array<i64: 8, 128>}]} {
    %c0 = arith.constant 0 : index
    %c0_0 = arith.constant 0 : index
    %0 = vector.load %arg1[%c0, %c0_0] : memref<8x128xf32, #tpu.memory_space<vmem>>, vector<8x128xf32>
    %c0_1 = arith.constant 0 : index
    %c0_2 = arith.constant 0 : index
    %1 = vector.load %arg2[%c0_1, %c0_2] : memref<8x128xf32, #tpu.memory_space<vmem>>, vector<8x128xf32>
    %2 = arith.truncf %0 : vector<8x128xf32> to vector<8x128xbf16>
    %3 = arith.truncf %1 : vector<8x128xf32> to vector<8x128xbf16>
    %c0_3 = arith.constant 0 : index
    %c0_4 = arith.constant 0 : index
    %4 = vector.load %arg6[%c0_3, %c0_4] : memref<1x384xf32, #tpu.memory_space<vmem>>, vector<1x384xf32>
    %c0_5 = arith.constant 0 : index
    %c0_6 = arith.constant 0 : index
    %5 = vector.load %arg3[%c0_5, %c0_6] : memref<128x384xbf16, #tpu.memory_space<vmem>>, vector<128x384xbf16>
    %cst = arith.constant dense<0.000000e+00> : vector<8x384xf32>
    %6 = tpu.matmul %2, %5, %cst {dimension_numbers = #tpu.dot_dimension_numbers<[1], [0], [0], [1], [0, 0, 1, 1], [], []>} : vector<8x128xbf16>, vector<128x384xbf16>, vector<8x384xf32> -> vector<8x384xf32>
    %7 = vector.broadcast %4 : vector<1x384xf32> to vector<8x384xf32>
    %8 = arith.addf %6, %7 : vector<8x384xf32>
    %c0_7 = arith.constant 0 : index
    %c0_8 = arith.constant 0 : index
    %9 = vector.load %arg4[%c0_7, %c0_8] : memref<128x256xbf16, #tpu.memory_space<vmem>>, vector<128x256xbf16>
    %cst_9 = arith.constant dense<0.000000e+00> : vector<8x256xf32>
    %10 = tpu.matmul %3, %9, %cst_9 {dimension_numbers = #tpu.dot_dimension_numbers<[1], [0], [0], [1], [0, 0, 1, 1], [], []>} : vector<8x128xbf16>, vector<128x256xbf16>, vector<8x256xf32> -> vector<8x256xf32>
    %11 = vector.extract_strided_slice %8 {offsets = [0, 0], sizes = [8, 128], strides = [1, 1]} : vector<8x384xf32> to vector<8x128xf32>
    %12 = vector.extract_strided_slice %10 {offsets = [0, 0], sizes = [8, 128], strides = [1, 1]} : vector<8x256xf32> to vector<8x128xf32>
    %13 = arith.addf %11, %12 : vector<8x128xf32>
    %14 = arith.negf %13 : vector<8x128xf32>
    %15 = math.exp %14 : vector<8x128xf32>
    %cst_10 = arith.constant 1.000000e+00 : f32
    %16 = vector.broadcast %cst_10 : f32 to vector<8x128xf32>
    %17 = arith.addf %16, %15 : vector<8x128xf32>
    %18 = arith.divf %16, %17 : vector<8x128xf32>
    %19 = vector.extract_strided_slice %8 {offsets = [0, 128], sizes = [8, 128], strides = [1, 1]} : vector<8x384xf32> to vector<8x128xf32>
    %20 = vector.extract_strided_slice %10 {offsets = [0, 128], sizes = [8, 128], strides = [1, 1]} : vector<8x256xf32> to vector<8x128xf32>
    %21 = arith.addf %19, %20 : vector<8x128xf32>
    %22 = arith.negf %21 : vector<8x128xf32>
    %23 = math.exp %22 : vector<8x128xf32>
    %cst_11 = arith.constant 1.000000e+00 : f32
    %24 = vector.broadcast %cst_11 : f32 to vector<8x128xf32>
    %25 = arith.addf %24, %23 : vector<8x128xf32>
    %26 = arith.divf %24, %25 : vector<8x128xf32>
    %27 = arith.mulf %1, %26 : vector<8x128xf32>
    %28 = arith.truncf %27 : vector<8x128xf32> to vector<8x128xbf16>
    %29 = vector.extract_strided_slice %8 {offsets = [0, 256], sizes = [8, 128], strides = [1, 1]} : vector<8x384xf32> to vector<8x128xf32>
    %c0_12 = arith.constant 0 : index
    %c0_13 = arith.constant 0 : index
    %30 = vector.load %arg5[%c0_12, %c0_13] : memref<128x128xbf16, #tpu.memory_space<vmem>>, vector<128x128xbf16>
    %cst_14 = arith.constant dense<0.000000e+00> : vector<8x128xf32>
    %31 = tpu.matmul %28, %30, %cst_14 {dimension_numbers = #tpu.dot_dimension_numbers<[1], [0], [0], [1], [0, 0, 1, 1], [], []>} : vector<8x128xbf16>, vector<128x128xbf16>, vector<8x128xf32> -> vector<8x128xf32>
    %32 = arith.addf %29, %31 : vector<8x128xf32>
    %cst_15 = arith.constant 0.000000e+00 : f32
    %33 = vector.broadcast %cst_15 : f32 to vector<8x128xf32>
    %34 = arith.maximumf %32, %33 : vector<8x128xf32>
    %35 = arith.subf %1, %34 : vector<8x128xf32>
    %36 = arith.mulf %18, %35 : vector<8x128xf32>
    %37 = arith.addf %34, %36 : vector<8x128xf32>
    %c0_16 = arith.constant 0 : index
    %c0_17 = arith.constant 0 : index
    %38 = vector.load %arg7[%c0_16, %c0_17] : memref<8x128xf32, #tpu.memory_space<vmem>>, vector<8x128xf32>
    tpu.vector_store %arg7[%c0_16, %c0_17], %37 {strides = array<i32>} : memref<8x128xf32, #tpu.memory_space<vmem>>, vector<8x128xf32>,
    return
  }
  func.func @transform_0(%arg0: i32) -> (i32, i32) {
    %c0_i32 = arith.constant 0 : i32
    %c0_i32_0 = arith.constant 0 : i32
    return %arg0, %c0_i32 : i32, i32
  }
  func.func @transform_1(%arg0: i32) -> (i32, i32) {
    %c0_i32 = arith.constant 0 : i32
    %c0_i32_0 = arith.constant 0 : i32
    return %arg0, %c0_i32 : i32, i32
  }
  func.func @transform_2(%arg0: i32) -> (i32, i32) {
    %c0_i32 = arith.constant 0 : i32
    %c0_i32_0 = arith.constant 0 : i32
    %c0_i32_1 = arith.constant 0 : i32
    return %c0_i32, %c0_i32_0 : i32, i32
  }
  func.func @transform_3(%arg0: i32) -> (i32, i32) {
    %c0_i32 = arith.constant 0 : i32
    %c0_i32_0 = arith.constant 0 : i32
    %c0_i32_1 = arith.constant 0 : i32
    return %c0_i32, %c0_i32_0 : i32, i32
  }
  func.func @transform_4(%arg0: i32) -> (i32, i32) {
    %c0_i32 = arith.constant 0 : i32
    %c0_i32_0 = arith.constant 0 : i32
    %c0_i32_1 = arith.constant 0 : i32
    return %c0_i32, %c0_i32_0 : i32, i32
  }
  func.func @transform_5(%arg0: i32) -> (i32, i32) {
    %c0_i32 = arith.constant 0 : i32
    %c0_i32_0 = arith.constant 0 : i32
    %c0_i32_1 = arith.constant 0 : i32
    return %c0_i32, %c0_i32_0 : i32, i32
  }
  func.func @transform_6(%arg0: i32) -> (i32, i32) {
    %c0_i32 = arith.constant 0 : i32
    %c0_i32_0 = arith.constant 0 : i32
    return %arg0, %c0_i32 : i32, i32
  }
}

</mosaic_0001>

<llo_original>
// kernel: tpu_custom_call.1
$region0: #{tpu_custom_call.1}
  #allocation0 [shape = 'u32[]', space=smem, size = 0x4, offset = 0x4, fixed_abs, tag = 'smem constant byte address 0x4 - core index']
  #allocation1 [shape = 'u32[144,128]{1,0:T(1,128)}', space=vmem, size = 0x12000, scoped, tag = 'internal scratch']
  %s0 = inlined_call_operand.hbm [shape: f32[8,128], index: 0, kind: input, shape index: {}]
  %s1 = inlined_call_operand.hbm [shape: f32[8,128], index: 1, kind: input, shape index: {}]
  %s2 = inlined_call_operand.hbm [shape: bf16[128,384], index: 2, kind: input, shape index: {}]
  %s3 = inlined_call_operand.hbm [shape: bf16[128,256], index: 3, kind: input, shape index: {}]
  %s4 = inlined_call_operand.hbm [shape: bf16[128,128], index: 4, kind: input, shape index: {}]
  %s5 = inlined_call_operand.vmem [shape: f32[1,384], index: 5, kind: input, shape index: {}]
  %s6 = inlined_call_operand.hbm [shape: f32[8,128], index: 6, kind: output, shape index: {}]
  %s7 = sld [smem:[#allocation0]]
  $region54: #{tpu_custom_call.1} parent=0
    _
  %s9 = ssub.s32 1, %s7
  %s10 = scalar_select 0, %s9, %s7
  $region1: #{tpu_custom_call.1} parent=0
    #allocation2 [shape = 'u8[4096]{0}', space=vmem, size = 0x1000, scoped, tag = 'input window, operand 0, single buffered']
    #allocation3 [shape = 's32[1]{0}', space=sflag, size = 0x4, scoped, tag = 'scoped memory for tpu_custom_call.1']
    #allocation4 [shape = 's32[1]{0}', space=sflag, size = 0x4, scoped, tag = 'scoped memory for tpu_custom_call.1']
    #allocation5 [shape = 'u8[4096]{0}', space=vmem, size = 0x1000, scoped, tag = 'input window, operand 1, single buffered']
    #allocation6 [shape = 's32[1]{0}', space=sflag, size = 0x4, scoped, tag = 'scoped memory for tpu_custom_call.1']
    #allocation7 [shape = 'u8[98304]{0}', space=vmem, size = 0x18000, scoped, tag = 'input window, operand 2, single buffered']
    #allocation8 [shape = 'u8[65536]{0}', space=vmem, size = 0x10000, scoped, tag = 'input window, operand 3, single buffered']
    #allocation9 [shape = 's32[1]{0}', space=sflag, size = 0x4, scoped, tag = 'scoped memory for tpu_custom_call.1']
    #allocation10 [shape = 'u8[32768]{0}', space=vmem, size = 0x8000, scoped, tag = 'input window, operand 4, single buffered']
    #allocation11 [shape = 'u8[4096]{0}', space=vmem, size = 0x1000, scoped, tag = 'output window, operand 0, single buffered']
    %11 = vsyncpa [#allocation3], 0
    %12 = vsyncpa [#allocation6], 0
    %13 = vsyncpa [#allocation9], 0
    %14 = vsyncpa [#allocation4], 0
    // Predicated region
    $region2: #{tpu_custom_call.1} parent=1 // pred_check
      _
    $region3: #{tpu_custom_call.1} parent=1 // pred_check_branch
      %16 = sbr.rel (0) target = $region5
    $region4: #{tpu_custom_call.1} parent=1 // pred_region
      %s18 = ssub.s32 128, 128
      %19 = vsyncadd [#allocation3], %s18
      %s21 = sshll.u32 [#allocation2], 4
      %s22 = int_to_ptr.vmem [resolvable:$true] %s21
      %24 = dma.hbm_to_vmem [thread:$0]  %s0, 128, %s22, [#allocation3]
    $region5: #{tpu_custom_call.1} parent=1 // pred_fallthru
      _
    // Predicated region
    $region6: #{tpu_custom_call.1} parent=1 // pred_check
      _
    $region7: #{tpu_custom_call.1} parent=1 // pred_check_branch
      %26 = sbr.rel (0) target = $region9
    $region8: #{tpu_custom_call.1} parent=1 // pred_region
      %s28 = ssub.s32 128, 128
      %29 = vsyncadd [#allocation6], %s28
      %s31 = sshll.u32 [#allocation5], 4
      %s32 = int_to_ptr.vmem [resolvable:$true] %s31
      %34 = dma.hbm_to_vmem [thread:$0]  %s1, 128, %s32, [#allocation6]
    $region9: #{tpu_custom_call.1} parent=1 // pred_fallthru
      _
    // Predicated region
    $region10: #{tpu_custom_call.1} parent=1 // pred_check
      _
    $region11: #{tpu_custom_call.1} parent=1 // pred_check_branch
      %36 = sbr.rel (0) target = $region13
    $region12: #{tpu_custom_call.1} parent=1 // pred_region
      %s38 = ssub.s32 3072, 3072
      %39 = vsyncadd [#allocation6], %s38
      %s40 = sshll.u32 [#allocation7], 4
      %s41 = int_to_ptr.vmem [resolvable:$true] %s40
      %46 = dma.hbm_to_vmem [thread:$0]  %s2, 3072, %s41, [#allocation6], 192, 192, 12
    $region13: #{tpu_custom_call.1} parent=1 // pred_fallthru
      _
    // Predicated region
    $region14: #{tpu_custom_call.1} parent=1 // pred_check
      _
    $region15: #{tpu_custom_call.1} parent=1 // pred_check_branch
      %48 = sbr.rel (0) target = $region17
    $region16: #{tpu_custom_call.1} parent=1 // pred_region
      %s50 = ssub.s32 2048, 2048
      %51 = vsyncadd [#allocation9], %s50
      %s52 = sshll.u32 [#allocation8], 4
      %s53 = int_to_ptr.vmem [resolvable:$true] %s52
      %58 = dma.hbm_to_vmem [thread:$0]  %s3, 2048, %s53, [#allocation9], 128, 128, 8
    $region17: #{tpu_custom_call.1} parent=1 // pred_fallthru
      _
    // Predicated region
    $region18: #{tpu_custom_call.1} parent=1 // pred_check
      _
    $region19: #{tpu_custom_call.1} parent=1 // pred_check_branch
      %60 = sbr.rel (0) target = $region21
    $region20: #{tpu_custom_call.1} parent=1 // pred_region
      %s62 = ssub.s32 1024, 1024
      %63 = vsyncadd [#allocation9], %s62
      %s64 = sshll.u32 [#allocation10], 4
      %s65 = int_to_ptr.vmem [resolvable:$true] %s64
      %70 = dma.hbm_to_vmem [thread:$0]  %s4, 1024, %s65, [#allocation9], 64, 64, 4
    $region21: #{tpu_custom_call.1} parent=1 // pred_fallthru
      _
    // Predicated region
    $region22: #{tpu_custom_call.1} parent=1 // pred_check
      _
    $region23: #{tpu_custom_call.1} parent=1 // pred_check_branch
      %72 = sbr.rel (0) target = $region25
    $region24: #{tpu_custom_call.1} parent=1 // pred_region
      _
    $region25: #{tpu_custom_call.1} parent=1 // pred_fallthru
      _
    // Predicated region
    $region26: #{tpu_custom_call.1} parent=1 // pred_check
      _
    $region27: #{tpu_custom_call.1} parent=1 // pred_check_branch
      %74 = sbr.rel (0) target = $region29
    $region28: #{tpu_custom_call.1} parent=1 // pred_region
      %75 = dma.done [#allocation3], 128
    $region29: #{tpu_custom_call.1} parent=1 // pred_fallthru
      _
    // Predicated region
    $region30: #{tpu_custom_call.1} parent=1 // pred_check
      _
    $region31: #{tpu_custom_call.1} parent=1 // pred_check_branch
      %77 = sbr.rel (0) target = $region33
    $region32: #{tpu_custom_call.1} parent=1 // pred_region
      %78 = dma.done [#allocation6], 128
    $region33: #{tpu_custom_call.1} parent=1 // pred_fallthru
      _
    // Predicated region
    $region34: #{tpu_custom_call.1} parent=1 // pred_check
      _
    $region35: #{tpu_custom_call.1} parent=1 // pred_check_branch
      %80 = sbr.rel (0) target = $region37
    $region36: #{tpu_custom_call.1} parent=1 // pred_region
      %81 = dma.done [#allocation6], 3072
    $region37: #{tpu_custom_call.1} parent=1 // pred_fallthru
      _
    // Predicated region
    $region38: #{tpu_custom_call.1} parent=1 // pred_check
      _
    $region39: #{tpu_custom_call.1} parent=1 // pred_check_branch
      %83 = sbr.rel (0) target = $region41
    $region40: #{tpu_custom_call.1} parent=1 // pred_region
      %84 = dma.done [#allocation9], 2048
    $region41: #{tpu_custom_call.1} parent=1 // pred_fallthru
      _
    // Predicated region
    $region42: #{tpu_custom_call.1} parent=1 // pred_check
      _
    $region43: #{tpu_custom_call.1} parent=1 // pred_check_branch
      %86 = sbr.rel (0) target = $region45
    $region44: #{tpu_custom_call.1} parent=1 // pred_region
      %87 = dma.done [#allocation9], 1024
    $region45: #{tpu_custom_call.1} parent=1 // pred_fallthru
      _
    %v89 = vld [vmem:[#allocation2] sm:$0xff]
    %v90 = vld [vmem:[#allocation5] sm:$0xff]
    %v91 = vpack.c.bf16 %v89, %v89
    %v92 = vpack.c.bf16 %v90, %v90
    %v93 = vld [vmem:[%s5] sm:$0x7]
    %v94 = vld [vmem:[#allocation7] sm:$0xff]
    %v95 = vld [vmem:[#allocation7 + $0x8] sm:$0xf]
    %v96 = vld [vmem:[#allocation7 + $0xc] sm:$0xff]
    %v97 = vld [vmem:[#allocation7 + $0x14] sm:$0xf]
    %v98 = vld [vmem:[#allocation7 + $0x18] sm:$0xff]
    %v99 = vld [vmem:[#allocation7 + $0x20] sm:$0xf]
    %v100 = vld [vmem:[#allocation7 + $0x24] sm:$0xff]
    %v101 = vld [vmem:[#allocation7 + $0x2c] sm:$0xf]
    %v102 = vld [vmem:[#allocation7 + $0x30] sm:$0xff]
    %v103 = vld [vmem:[#allocation7 + $0x38] sm:$0xf]
    %v104 = vld [vmem:[#allocation7 + $0x3c] sm:$0xff]
    %v105 = vld [vmem:[#allocation7 + $0x44] sm:$0xf]
    %v106 = vld [vmem:[#allocation7 + $0x48] sm:$0xff]
    %v107 = vld [vmem:[#allocation7 + $0x50] sm:$0xf]
    %v108 = vld [vmem:[#allocation7 + $0x54] sm:$0xff]
    %v109 = vld [vmem:[#allocation7 + $0x5c] sm:$0xf]
    %v110 = vld [vmem:[#allocation7 + $0x60] sm:$0xff]
    %v111 = vld [vmem:[#allocation7 + $0x68] sm:$0xf]
    %v112 = vld [vmem:[#allocation7 + $0x6c] sm:$0xff]
    %v113 = vld [vmem:[#allocation7 + $0x74] sm:$0xf]
    %v114 = vld [vmem:[#allocation7 + $0x78] sm:$0xff]
    %v115 = vld [vmem:[#allocation7 + $0x80] sm:$0xf]
    %v116 = vld [vmem:[#allocation7 + $0x84] sm:$0xff]
    %v117 = vld [vmem:[#allocation7 + $0x8c] sm:$0xf]
    %v118 = vld [vmem:[#allocation7 + $0x90] sm:$0xff]
    %v119 = vld [vmem:[#allocation7 + $0x98] sm:$0xf]
    %v120 = vld [vmem:[#allocation7 + $0x9c] sm:$0xff]
    %v121 = vld [vmem:[#allocation7 + $0xa4] sm:$0xf]
    %v122 = vld [vmem:[#allocation7 + $0xa8] sm:$0xff]
    %v123 = vld [vmem:[#allocation7 + $0xb0] sm:$0xf]
    %v124 = vld [vmem:[#allocation7 + $0xb4] sm:$0xff]
    %v125 = vld [vmem:[#allocation7 + $0xbc] sm:$0xf]
    %v127 = vlaneseq
    %v128 = vshrl.u32 %v127, 7
    %v129 = vsub.s32 0, %v128
    %v130 = vrot.slane %v93, %v129
    %v131 = vlaneseq
    %v132 = vshrl.u32 %v131, 7
    %v133 = vsub.s32 1, %v132
    %v134 = vrot.slane %v93, %v133
    %v135 = vlaneseq
    %v136 = vshrl.u32 %v135, 7
    %v137 = vsub.s32 2, %v136
    %v138 = vrot.slane %v93, %v137
    %v174 = vunpack.c.l.b16 %v94
    %v175 = vunpack.c.h.b16 %v94
    %v176 = vunpack.c.l.b16 %v95
    %v177 = vunpack.c.l.b16 %v96
    %v178 = vunpack.c.h.b16 %v96
    %v179 = vunpack.c.l.b16 %v97
    %v180 = vunpack.c.l.b16 %v98
    %v181 = vunpack.c.h.b16 %v98
    %v182 = vunpack.c.l.b16 %v99
    %v183 = vunpack.c.l.b16 %v100
    %v184 = vunpack.c.h.b16 %v100
    %v185 = vunpack.c.l.b16 %v101
    %v186 = vunpack.c.l.b16 %v102
    %v187 = vunpack.c.h.b16 %v102
    %v188 = vunpack.c.l.b16 %v103
    %v189 = vunpack.c.l.b16 %v104
    %v190 = vunpack.c.h.b16 %v104
    %v191 = vunpack.c.l.b16 %v105
    %v192 = vunpack.c.l.b16 %v106
    %v193 = vunpack.c.h.b16 %v106
    %v194 = vunpack.c.l.b16 %v107
    %v195 = vunpack.c.l.b16 %v108
    %v196 = vunpack.c.h.b16 %v108
    %v197 = vunpack.c.l.b16 %v109
    %v198 = vunpack.c.l.b16 %v110
    %v199 = vunpack.c.h.b16 %v110
    %v200 = vunpack.c.l.b16 %v111
    %v201 = vunpack.c.l.b16 %v112
    %v202 = vunpack.c.h.b16 %v112
    %v203 = vunpack.c.l.b16 %v113
    %v204 = vunpack.c.l.b16 %v114
    %v205 = vunpack.c.h.b16 %v114
    %v206 = vunpack.c.l.b16 %v115
    %v207 = vunpack.c.l.b16 %v116
    %v208 = vunpack.c.h.b16 %v116
    %v209 = vunpack.c.l.b16 %v117
    %v210 = vunpack.c.l.b16 %v118
    %v211 = vunpack.c.h.b16 %v118
    %v212 = vunpack.c.l.b16 %v119
    %v213 = vunpack.c.l.b16 %v120
    %v214 = vunpack.c.h.b16 %v120
    %v215 = vunpack.c.l.b16 %v121
    %v216 = vunpack.c.l.b16 %v122
    %v217 = vunpack.c.h.b16 %v122
    %v218 = vunpack.c.l.b16 %v123
    %v219 = vunpack.c.l.b16 %v124
    %v220 = vunpack.c.h.b16 %v124
    %v221 = vunpack.c.l.b16 %v125
    %v222 = vpack.c.b16 %v177, %v174
    %v223 = vpack.c.b16 %v178, %v175
    %v224 = vpack.c.b16 %v179, %v176
    %v225 = vpack.c.b16 %v183, %v180
    %v226 = vpack.c.b16 %v184, %v181
    %v227 = vpack.c.b16 %v185, %v182
    %v228 = vpack.c.b16 %v189, %v186
    %v229 = vpack.c.b16 %v190, %v187
    %v230 = vpack.c.b16 %v191, %v188
    %v231 = vpack.c.b16 %v195, %v192
    %v232 = vpack.c.b16 %v196, %v193
    %v233 = vpack.c.b16 %v197, %v194
    %v234 = vpack.c.b16 %v201, %v198
    %v235 = vpack.c.b16 %v202, %v199
    %v236 = vpack.c.b16 %v203, %v200
    %v237 = vpack.c.b16 %v207, %v204
    %v238 = vpack.c.b16 %v208, %v205
    %v239 = vpack.c.b16 %v209, %v206
    %v240 = vpack.c.b16 %v213, %v210
    %v241 = vpack.c.b16 %v214, %v211
    %v242 = vpack.c.b16 %v215, %v212
    %v243 = vpack.c.b16 %v219, %v216
    %v244 = vpack.c.b16 %v220, %v217
    %v245 = vpack.c.b16 %v221, %v218
    %270 = vmatprep.subr.bf16.mxu0 %v223
    %271 = vmatpush1.bf16.msra.mxu0 %v222
    %272 = vmatprep.subr.bf16.mxu0 %v226
    %273 = vmatpush1.bf16.msra.mxu0 %v225
    %274 = vmatprep.subr.bf16.mxu0 %v229
    %275 = vmatpush1.bf16.msra.mxu0 %v228
    %276 = vmatprep.subr.bf16.mxu0 %v232
    %277 = vmatpush1.bf16.msra.mxu0 %v231
    %278 = vmatprep.subr.bf16.mxu0 %v235
    %279 = vmatpush1.bf16.msra.mxu0 %v234
    %280 = vmatprep.subr.bf16.mxu0 %v238
    %281 = vmatpush1.bf16.msra.mxu0 %v237
    %282 = vmatprep.subr.bf16.mxu0 %v241
    %283 = vmatpush1.bf16.msra.mxu0 %v240
    %284 = vmatprep.subr.bf16.mxu0 %v244
    %285 = vmatpush1.bf16.msra.mxu0 %v243
    %286 = vmatprep.subr.bf16.mxu0 0
    %287 = vmatpush1.bf16.msra.mxu0 0
    %288 = vmatprep.subr.bf16.mxu0 0
    %289 = vmatpush1.bf16.msra.mxu0 0
    %290 = vmatprep.subr.bf16.mxu0 0
    %291 = vmatpush1.bf16.msra.mxu0 0
    %292 = vmatprep.subr.bf16.mxu0 0
    %293 = vmatpush1.bf16.msra.mxu0 0
    %294 = vmatprep.subr.bf16.mxu0 0
    %295 = vmatpush1.bf16.msra.mxu0 0
    %296 = vmatprep.subr.bf16.mxu0 0
    %297 = vmatpush1.bf16.msra.mxu0 0
    %298 = vmatprep.subr.bf16.mxu0 0
    %299 = vmatpush1.bf16.msra.mxu0 0
    %300 = vmatprep.subr.bf16.mxu0 0
    %301 = vmatpush1.bf16.msra.mxu0 0
    %302 = vmatprep.mubr.bf16.mxu0 0
    %303 = vmatmul.mubr.bf16.gmra.mrb[0].mxu0 %v91
    %v304 = vpop.f32.mrb[0].mxu0
    %v305 = vadd.f32 %v130, %v304
    %v306 = vpop.f32.mrb[0].mxu0
    %v307 = vadd.f32 %v134, %v306
    %v308 = vpop.f32.mrb[0].mxu0
    %v309 = vpop.f32.mrb[0].mxu0
    %310 = vdwg.mxu0
    %311 = vmatprep.subr.bf16.mxu0 0
    %312 = vmatpush1.bf16.msra.mxu0 %v224
    %313 = vmatprep.subr.bf16.mxu0 0
    %314 = vmatpush1.bf16.msra.mxu0 %v227
    %315 = vmatprep.subr.bf16.mxu0 0
    %316 = vmatpush1.bf16.msra.mxu0 %v230
    %317 = vmatprep.subr.bf16.mxu0 0
    %318 = vmatpush1.bf16.msra.mxu0 %v233
    %319 = vmatprep.subr.bf16.mxu0 0
    %320 = vmatpush1.bf16.msra.mxu0 %v236
    %321 = vmatprep.subr.bf16.mxu0 0
    %322 = vmatpush1.bf16.msra.mxu0 %v239
    %323 = vmatprep.subr.bf16.mxu0 0
    %324 = vmatpush1.bf16.msra.mxu0 %v242
    %325 = vmatprep.subr.bf16.mxu0 0
    %326 = vmatpush1.bf16.msra.mxu0 %v245
    %327 = vmatprep.subr.bf16.mxu0 0
    %328 = vmatpush1.bf16.msra.mxu0 0
    %329 = vmatprep.subr.bf16.mxu0 0
    %330 = vmatpush1.bf16.msra.mxu0 0
    %331 = vmatprep.subr.bf16.mxu0 0
    %332 = vmatpush1.bf16.msra.mxu0 0
    %333 = vmatprep.subr.bf16.mxu0 0
    %334 = vmatpush1.bf16.msra.mxu0 0
    %335 = vmatprep.subr.bf16.mxu0 0
    %336 = vmatpush1.bf16.msra.mxu0 0
    %337 = vmatprep.subr.bf16.mxu0 0
    %338 = vmatpush1.bf16.msra.mxu0 0
    %339 = vmatprep.subr.bf16.mxu0 0
    %340 = vmatpush1.bf16.msra.mxu0 0
    %341 = vmatprep.subr.bf16.mxu0 0
    %342 = vmatpush1.bf16.msra.mxu0 0
    %343 = vmatprep.mubr.bf16.mxu0 0
    %344 = vmatmul.mubr.bf16.gmra.mrb[0].mxu0 %v91
    %v345 = vpop.f32.mrb[0].mxu0
    %v346 = vadd.f32 %v138, %v345
    %v347 = vpop.f32.mrb[0].mxu0
    %v348 = vpop.f32.mrb[0].mxu0
    %v349 = vpop.f32.mrb[0].mxu0
    %350 = vdwg.mxu0
    %v351 = vld [vmem:[#allocation8] sm:$0xff]
    %v352 = vld [vmem:[#allocation8 + $0x8] sm:$0xff]
    %v353 = vld [vmem:[#allocation8 + $0x10] sm:$0xff]
    %v354 = vld [vmem:[#allocation8 + $0x18] sm:$0xff]
    %v355 = vld [vmem:[#allocation8 + $0x20] sm:$0xff]
    %v356 = vld [vmem:[#allocation8 + $0x28] sm:$0xff]
    %v357 = vld [vmem:[#allocation8 + $0x30] sm:$0xff]
    %v358 = vld [vmem:[#allocation8 + $0x38] sm:$0xff]
    %v359 = vld [vmem:[#allocation8 + $0x40] sm:$0xff]
    %v360 = vld [vmem:[#allocation8 + $0x48] sm:$0xff]
    %v361 = vld [vmem:[#allocation8 + $0x50] sm:$0xff]
    %v362 = vld [vmem:[#allocation8 + $0x58] sm:$0xff]
    %v363 = vld [vmem:[#allocation8 + $0x60] sm:$0xff]
    %v364 = vld [vmem:[#allocation8 + $0x68] sm:$0xff]
    %v365 = vld [vmem:[#allocation8 + $0x70] sm:$0xff]
    %v366 = vld [vmem:[#allocation8 + $0x78] sm:$0xff]
    %v383 = vunpack.c.l.b16 %v351
    %v384 = vunpack.c.h.b16 %v351
    %v385 = vunpack.c.l.b16 %v352
    %v386 = vunpack.c.h.b16 %v352
    %v387 = vunpack.c.l.b16 %v353
    %v388 = vunpack.c.h.b16 %v353
    %v389 = vunpack.c.l.b16 %v354
    %v390 = vunpack.c.h.b16 %v354
    %v391 = vunpack.c.l.b16 %v355
    %v392 = vunpack.c.h.b16 %v355
    %v393 = vunpack.c.l.b16 %v356
    %v394 = vunpack.c.h.b16 %v356
    %v395 = vunpack.c.l.b16 %v357
    %v396 = vunpack.c.h.b16 %v357
    %v397 = vunpack.c.l.b16 %v358
    %v398 = vunpack.c.h.b16 %v358
    %v399 = vunpack.c.l.b16 %v359
    %v400 = vunpack.c.h.b16 %v359
    %v401 = vunpack.c.l.b16 %v360
    %v402 = vunpack.c.h.b16 %v360
    %v403 = vunpack.c.l.b16 %v361
    %v404 = vunpack.c.h.b16 %v361
    %v405 = vunpack.c.l.b16 %v362
    %v406 = vunpack.c.h.b16 %v362
    %v407 = vunpack.c.l.b16 %v363
    %v408 = vunpack.c.h.b16 %v363
    %v409 = vunpack.c.l.b16 %v364
    %v410 = vunpack.c.h.b16 %v364
    %v411 = vunpack.c.l.b16 %v365
    %v412 = vunpack.c.h.b16 %v365
    %v413 = vunpack.c.l.b16 %v366
    %v414 = vunpack.c.h.b16 %v366
    %v415 = vpack.c.b16 %v385, %v383
    %v416 = vpack.c.b16 %v386, %v384
    %v417 = vpack.c.b16 %v389, %v387
    %v418 = vpack.c.b16 %v390, %v388
    %v419 = vpack.c.b16 %v393, %v391
    %v420 = vpack.c.b16 %v394, %v392
    %v421 = vpack.c.b16 %v397, %v395
    %v422 = vpack.c.b16 %v398, %v396
    %v423 = vpack.c.b16 %v401, %v399
    %v424 = vpack.c.b16 %v402, %v400
    %v425 = vpack.c.b16 %v405, %v403
    %v426 = vpack.c.b16 %v406, %v404
    %v427 = vpack.c.b16 %v409, %v407
    %v428 = vpack.c.b16 %v410, %v408
    %v429 = vpack.c.b16 %v413, %v411
    %v430 = vpack.c.b16 %v414, %v412
    %447 = vmatprep.subr.bf16.mxu0 %v416
    %448 = vmatpush1.bf16.msra.mxu0 %v415
    %449 = vmatprep.subr.bf16.mxu0 %v418
    %450 = vmatpush1.bf16.msra.mxu0 %v417
    %451 = vmatprep.subr.bf16.mxu0 %v420
    %452 = vmatpush1.bf16.msra.mxu0 %v419
    %453 = vmatprep.subr.bf16.mxu0 %v422
    %454 = vmatpush1.bf16.msra.mxu0 %v421
    %455 = vmatprep.subr.bf16.mxu0 %v424
    %456 = vmatpush1.bf16.msra.mxu0 %v423
    %457 = vmatprep.subr.bf16.mxu0 %v426
    %458 = vmatpush1.bf16.msra.mxu0 %v425
    %459 = vmatprep.subr.bf16.mxu0 %v428
    %460 = vmatpush1.bf16.msra.mxu0 %v427
    %461 = vmatprep.subr.bf16.mxu0 %v430
    %462 = vmatpush1.bf16.msra.mxu0 %v429
    %463 = vmatprep.subr.bf16.mxu0 0
    %464 = vmatpush1.bf16.msra.mxu0 0
    %465 = vmatprep.subr.bf16.mxu0 0
    %466 = vmatpush1.bf16.msra.mxu0 0
    %467 = vmatprep.subr.bf16.mxu0 0
    %468 = vmatpush1.bf16.msra.mxu0 0
    %469 = vmatprep.subr.bf16.mxu0 0
    %470 = vmatpush1.bf16.msra.mxu0 0
    %471 = vmatprep.subr.bf16.mxu0 0
    %472 = vmatpush1.bf16.msra.mxu0 0
    %473 = vmatprep.subr.bf16.mxu0 0
    %474 = vmatpush1.bf16.msra.mxu0 0
    %475 = vmatprep.subr.bf16.mxu0 0
    %476 = vmatpush1.bf16.msra.mxu0 0
    %477 = vmatprep.subr.bf16.mxu0 0
    %478 = vmatpush1.bf16.msra.mxu0 0
    %479 = vmatprep.mubr.bf16.mxu0 0
    %480 = vmatmul.mubr.bf16.gmra.mrb[0].mxu0 %v92
    %v481 = vpop.f32.mrb[0].mxu0
    %v482 = vadd.f32 0.0, %v481
    %v483 = vpop.f32.mrb[0].mxu0
    %v484 = vadd.f32 0.0, %v483
    %v485 = vpop.f32.mrb[0].mxu0
    %v486 = vpop.f32.mrb[0].mxu0
    %487 = vdwg.mxu0
    %v488 = vadd.f32 %v305, %v482
    %v489 = vxor.u32 %v488, 2147483648
    %v490 = vmul.f32 %v489, 1.442695
    %v491 = vpow.pop %v490
    %v492 = vadd.f32 %v491, 1.0
    %v493 = vrcp.pop %v492
    %v494 = vmul.f32 1.0, %v493
    %v495 = vadd.f32 %v307, %v484
    %v496 = vxor.u32 %v495, 2147483648
    %v497 = vmul.f32 %v496, 1.442695
    %v498 = vpow.pop %v497
    %v499 = vadd.f32 %v498, 1.0
    %v500 = vrcp.pop %v499
    %v501 = vmul.f32 1.0, %v500
    %v502 = vmul.f32 %v90, %v501
    %v503 = vpack.c.bf16 %v502, %v502
    %v504 = vld [vmem:[#allocation10] sm:$0xf]
    %v505 = vld [vmem:[#allocation10 + $0x4] sm:$0xf]
    %v506 = vld [vmem:[#allocation10 + $0x8] sm:$0xf]
    %v507 = vld [vmem:[#allocation10 + $0xc] sm:$0xf]
    %v508 = vld [vmem:[#allocation10 + $0x10] sm:$0xf]
    %v509 = vld [vmem:[#allocation10 + $0x14] sm:$0xf]
    %v510 = vld [vmem:[#allocation10 + $0x18] sm:$0xf]
    %v511 = vld [vmem:[#allocation10 + $0x1c] sm:$0xf]
    %v512 = vld [vmem:[#allocation10 + $0x20] sm:$0xf]
    %v513 = vld [vmem:[#allocation10 + $0x24] sm:$0xf]
    %v514 = vld [vmem:[#allocation10 + $0x28] sm:$0xf]
    %v515 = vld [vmem:[#allocation10 + $0x2c] sm:$0xf]
    %v516 = vld [vmem:[#allocation10 + $0x30] sm:$0xf]
    %v517 = vld [vmem:[#allocation10 + $0x34] sm:$0xf]
    %v518 = vld [vmem:[#allocation10 + $0x38] sm:$0xf]
    %v519 = vld [vmem:[#allocation10 + $0x3c] sm:$0xf]
    %v536 = vunpack.c.l.b16 %v504
    %v537 = vunpack.c.l.b16 %v505
    %v538 = vunpack.c.l.b16 %v506
    %v539 = vunpack.c.l.b16 %v507
    %v540 = vunpack.c.l.b16 %v508
    %v541 = vunpack.c.l.b16 %v509
    %v542 = vunpack.c.l.b16 %v510
    %v543 = vunpack.c.l.b16 %v511
    %v544 = vunpack.c.l.b16 %v512
    %v545 = vunpack.c.l.b16 %v513
    %v546 = vunpack.c.l.b16 %v514
    %v547 = vunpack.c.l.b16 %v515
    %v548 = vunpack.c.l.b16 %v516
    %v549 = vunpack.c.l.b16 %v517
    %v550 = vunpack.c.l.b16 %v518
    %v551 = vunpack.c.l.b16 %v519
    %v552 = vpack.c.b16 %v537, %v536
    %v553 = vpack.c.b16 %v539, %v538
    %v554 = vpack.c.b16 %v541, %v540
    %v555 = vpack.c.b16 %v543, %v542
    %v556 = vpack.c.b16 %v545, %v544
    %v557 = vpack.c.b16 %v547, %v546
    %v558 = vpack.c.b16 %v549, %v548
    %v559 = vpack.c.b16 %v551, %v550
    %568 = vmatprep.subr.bf16.mxu0 0
    %569 = vmatpush1.bf16.msra.mxu0 %v552
    %570 = vmatprep.subr.bf16.mxu0 0
    %571 = vmatpush1.bf16.msra.mxu0 %v553
    %572 = vmatprep.subr.bf16.mxu0 0
    %573 = vmatpush1.bf16.msra.mxu0 %v554
    %574 = vmatprep.subr.bf16.mxu0 0
    %575 = vmatpush1.bf16.msra.mxu0 %v555
    %576 = vmatprep.subr.bf16.mxu0 0
    %577 = vmatpush1.bf16.msra.mxu0 %v556
    %578 = vmatprep.subr.bf16.mxu0 0
    %579 = vmatpush1.bf16.msra.mxu0 %v557
    %580 = vmatprep.subr.bf16.mxu0 0
    %581 = vmatpush1.bf16.msra.mxu0 %v558
    %582 = vmatprep.subr.bf16.mxu0 0
    %583 = vmatpush1.bf16.msra.mxu0 %v559
    %584 = vmatprep.subr.bf16.mxu0 0
    %585 = vmatpush1.bf16.msra.mxu0 0
    %586 = vmatprep.subr.bf16.mxu0 0
    %587 = vmatpush1.bf16.msra.mxu0 0
    %588 = vmatprep.subr.bf16.mxu0 0
    %589 = vmatpush1.bf16.msra.mxu0 0
    %590 = vmatprep.subr.bf16.mxu0 0
    %591 = vmatpush1.bf16.msra.mxu0 0
    %592 = vmatprep.subr.bf16.mxu0 0
    %593 = vmatpush1.bf16.msra.mxu0 0
    %594 = vmatprep.subr.bf16.mxu0 0
    %595 = vmatpush1.bf16.msra.mxu0 0
    %596 = vmatprep.subr.bf16.mxu0 0
    %597 = vmatpush1.bf16.msra.mxu0 0
    %598 = vmatprep.subr.bf16.mxu0 0
    %599 = vmatpush1.bf16.msra.mxu0 0
    %600 = vmatprep.mubr.bf16.mxu0 0
    %601 = vmatmul.mubr.bf16.gmra.mrb[0].mxu0 %v503
    %v602 = vpop.f32.mrb[0].mxu0
    %v603 = vadd.f32 0.0, %v602
    %v604 = vpop.f32.mrb[0].mxu0
    %v605 = vpop.f32.mrb[0].mxu0
    %v606 = vpop.f32.mrb[0].mxu0
    %607 = vdwg.mxu0
    %v608 = vadd.f32 %v346, %v603
    %v609 = vmax.f32 %v608, 0.0
    %v610 = vsub.f32 %v90, %v609
    %v611 = vmul.f32 %v494, %v610
    %v612 = vadd.f32 %v609, %v611
    %613 = vst [vmem:[#allocation11] sm:$0xff] %v612
    // Predicated region
    $region46: #{tpu_custom_call.1} parent=1 // pred_check
      _
    $region47: #{tpu_custom_call.1} parent=1 // pred_check_branch
      %615 = sbr.rel (0) target = $region49
    $region48: #{tpu_custom_call.1} parent=1 // pred_region
      %s617 = ssub.s32 128, 128
      %618 = vsyncadd [#allocation4], %s617
      %s620 = sshll.u32 [#allocation11], 4
      %s621 = int_to_ptr.vmem [resolvable:$true] %s620
      %623 = dma.vmem_to_hbm [thread:$0]  %s621, 128, %s6, [#allocation4]
    $region49: #{tpu_custom_call.1} parent=1 // pred_fallthru
      _
    // Predicated region
    $region50: #{tpu_custom_call.1} parent=1 // pred_check
      _
    $region51: #{tpu_custom_call.1} parent=1 // pred_check_branch
      %625 = sbr.rel (0) target = $region53
    $region52: #{tpu_custom_call.1} parent=1 // pred_region
      %626 = dma.done [#allocation4], 128
    $region53: #{tpu_custom_call.1} parent=1 // pred_fallthru
      _
    %627 = vsyncpa [#allocation3], 1
    %628 = vsyncpa [#allocation6], 1
    %629 = vsyncpa [#allocation9], 1
    %630 = vsyncpa [#allocation4], 1

</llo_original>
